<compile_context>
chip_gen: v6e
topology: v6e:2x2x1
jax: 0.10.0
libtpu: 0.0.40
codegen_flags: <defaults>
</compile_context>

<pallas_src>
import numpy as np
import jax
import jax.numpy as jnp
from jax.experimental import pallas as pl
from jax.experimental.pallas import tpu as pltpu


# ----------------------------------------------------------------------------
# Host-side "buffer" construction (mirrors make_grid + grid_sample weights)
# ----------------------------------------------------------------------------
def make_warped_grid_np(row_bins: int, col_bins: int) -> np.ndarray:
    col_axis = np.linspace(1.0, -1.0, col_bins, dtype=np.float64)
    row_axis = np.linspace(-1.0, 1.0, row_bins, dtype=np.float64)
    rows, cols = np.meshgrid(row_axis, col_axis, indexing="ij")   # (Hb, Wb)
    theta = np.arctan2(rows, cols)
    gx = theta / np.pi                          # grid_sample x (width) coord
    magnitude = np.sqrt(rows ** 2 + cols ** 2)
    gy = -(magnitude / 1.0 * 2.0 - 1.0)         # grid_sample y (height) coord
    return np.stack([gx, gy], axis=-1)          # (Hb, Wb, 2), float64


def build_interp_matrix_np(warped_grid: np.ndarray, H: int, W: int) -> np.ndarray:
    """Dense bilinear interpolation matrix M (float64): out_flat = img_flat @ M.

    Reproduces torch grid_sample(mode='bilinear', padding_mode='zeros',
    align_corners=True) for a fixed grid.
    """
    Hb, Wb, _ = warped_grid.shape
    P = Hb * Wb
    gx = warped_grid[..., 0].reshape(-1)
    gy = warped_grid[..., 1].reshape(-1)
    # align_corners=True mapping from [-1, 1] to pixel coordinates
    ix = (gx + 1.0) * 0.5 * (W - 1)
    iy = (gy + 1.0) * 0.5 * (H - 1)
    x0 = np.floor(ix)
    y0 = np.floor(iy)
    x1 = x0 + 1.0
    y1 = y0 + 1.0
    wx1 = ix - x0
    wx0 = 1.0 - wx1
    wy1 = iy - y0
    wy0 = 1.0 - wy1

    M = np.zeros((H * W, P), dtype=np.float64)
    cols = np.arange(P)
    for yc, wy in ((y0, wy0), (y1, wy1)):
        for xc, wx in ((x0, wx0), (x1, wx1)):
            valid = (xc >= 0) & (xc <= W - 1) & (yc >= 0) & (yc <= H - 1)
            w = wy * wx * valid.astype(np.float64)   # zeros padding -> weight 0
            xi = np.clip(xc, 0, W - 1).astype(np.int64)
            yi = np.clip(yc, 0, H - 1).astype(np.int64)
            np.add.at(M, (yi * W + xi, cols), w)
    return M


def _round_up(x: int, m: int) -> int:
    return (x + m - 1) // m * m


def _largest_divisor(n: int, granule: int, cap: int) -> int:
    """Largest multiple of `granule` that divides `n` and is <= cap (>= granule)."""
    best = granule
    d = granule
    limit = min(n, cap)
    while d <= limit:
        if n % d == 0:
            best = d
        d += granule
    return best


# ----------------------------------------------------------------------------
# Factory: builds M once (host side), returns a jitted forward(image)
# ----------------------------------------------------------------------------
def make_cartesian_transform(row_bins: int, col_bins: int, H: int, W: int,
                             compute_dtype=jnp.bfloat16):
    P = row_bins * col_bins
    K = H * W
    K_pad = _round_up(K, 128)       # contraction dim (lane of img / sublane of M)
    P_pad = _round_up(P, 128)       # lane-dense output stores (no vst.msk)

    # Host-side buffer construction (done once, outside any jit trace),
    # pre-padded to the final kernel-facing shape.
    M_np = build_interp_matrix_np(make_warped_grid_np(row_bins, col_bins), H, W)
    M_pad_np = np.zeros((K_pad, P_pad), dtype=np.float32)
    M_pad_np[:K, :P] = M_np.astype(np.float32)
    # NOTE: bf16 M + in-kernel bf16 image cast gives ~1e-2 relative error on the
    # 4-tap sums (passes tolerance below); pass compute_dtype=jnp.float32 for
    # closer parity with torch f32 grid_sample.
    M_dev = jnp.asarray(M_pad_np, dtype=compute_dtype)
    m_itemsize = jnp.dtype(compute_dtype).itemsize

    # ---- Pallas kernels (accumulate directly into f32 out_ref, no scratch) ----
    def kernel_single(img_ref, m_ref, out_ref):
        # Whole contraction dim in one MXU dot; image cast to compute dtype
        # in-kernel (VPU slack under the MXU).
        out_ref[...] = jnp.dot(img_ref[...].astype(compute_dtype), m_ref[...],
                               preferred_element_type=jnp.float32)

    def kernel_kloop(img_ref, m_ref, out_ref):
        @pl.when(pl.program_id(2) == 0)
        def _init():
            out_ref[...] = jnp.zeros_like(out_ref)
        out_ref[...] += jnp.dot(img_ref[...].astype(compute_dtype), m_ref[...],
                                preferred_element_type=jnp.float32)

    VMEM_BUDGET = 12 * 1024 * 1024   # conservative across v5e/v6e/v7x defaults

    @jax.jit
    def forward(image):
        B, N, Hi, Wi = image.shape
        assert (Hi, Wi) == (H, W), "image spatial dims must match the buffer"

        BN = B * N
        BN_pad = _round_up(BN, 8)            # f32 image blocks -> sublane 8 ok

        # bn_tile = whole batch when it fits -> M streamed from HBM exactly once.
        bn_tile = _largest_divisor(BN_pad, 8, 512)
        n_i = BN_pad // bn_tile

        tn = _largest_divisor(P_pad, 128, 512)
        # v7x megacore: keep >=2 blocks on a parallel axis when everything else
        # collapsed to a single block (only possible if P_pad is splittable).
        if n_i == 1 and P_pad // tn == 1 and P_pad >= 256:
            tn = _largest_divisor(P_pad, 128, P_pad // 2)
        n_j = P_pad // tn

        def footprint(tk):
            return (2 * bn_tile * tk * 4            # f32 image blocks (x2 buf)
                    + bn_tile * tk * m_itemsize      # in-kernel cast temp
                    + 2 * tk * tn * m_itemsize       # M blocks (x2 buf)
                    + 2 * bn_tile * tn * 4)          # f32 output blocks (x2 buf)

        # Prefer dropping the K grid axis entirely (single dot, no accumulator).
        tk = K_pad
        if footprint(tk) > VMEM_BUDGET:
            tk = _largest_divisor(K_pad, 128, 2048)
            while tk > 128 and footprint(tk) > VMEM_BUDGET:
                tk = _largest_divisor(K_pad, 128, tk - 128)
        n_k = K_pad // tk

        # Image: fed as f32 (cast happens in-kernel). Pad only when required,
        # with zeros so the padded K tail can never inject NaN/Inf.
        img = image.reshape(BN, K).astype(jnp.float32)
        if BN_pad != BN or K_pad != K:
            img = jnp.pad(img, ((0, BN_pad - BN), (0, K_pad - K)))

        # Honest cost estimate (includes re-stream factors).
        img_reads = 1 if n_k == 1 else n_j
        cost = pl.CostEstimate(
            flops=2 * BN_pad * K_pad * P_pad,
            transcendentals=0,
            bytes_accessed=(img_reads * BN_pad * K_pad * 4
                            + n_i * K_pad * P_pad * m_itemsize
                            + BN_pad * P_pad * 4),
        )

        if n_k == 1:
            grid = (n_i, n_j)
            kernel = kernel_single
            in_specs = [
                pl.BlockSpec((bn_tile, K_pad), lambda i, j: (i, 0)),
                pl.BlockSpec((K_pad, tn), lambda i, j: (0, j)),
            ]
            out_spec = pl.BlockSpec((bn_tile, tn), lambda i, j: (i, j))
            dims = ("parallel", "parallel")
        else:
            grid = (n_i, n_j, n_k)
            kernel = kernel_kloop
            in_specs = [
                pl.BlockSpec((bn_tile, tk), lambda i, j, k: (i, k)),
                pl.BlockSpec((tk, tn), lambda i, j, k: (k, j)),
            ]
            out_spec = pl.BlockSpec((bn_tile, tn), lambda i, j, k: (i, j))
            dims = ("parallel", "parallel", "arbitrary")

        est = footprint(tk)
        vmem_limit = (min(48 * 1024 * 1024, 2 * est)
                      if est > 8 * 1024 * 1024 else None)

        out_flat = pl.pallas_call(
            kernel,
            out_shape=jax.ShapeDtypeStruct((BN_pad, P_pad), jnp.float32),
            grid=grid,
            in_specs=in_specs,
            out_specs=out_spec,
            compiler_params=pltpu.CompilerParams(
                dimension_semantics=dims,
                vmem_limit_bytes=vmem_limit,
            ),
            cost_estimate=cost,
        )(img, M_dev)

        out = out_flat[:BN, :P].reshape(B, N, row_bins, col_bins)
        return out

    return forward


# ----------------------------------------------------------------------------
# High-precision numpy reference (direct 4-corner gather) for correctness
# ----------------------------------------------------------------------------
def ref_grid_sample_np(image: np.ndarray, warped_grid: np.ndarray) -> np.ndarray:
    image = np.asarray(image, dtype=np.float64)
    B, N, H, W = image.shape
    gx = warped_grid[..., 0]
    gy = warped_grid[..., 1]
    ix = (gx + 1.0) * 0.5 * (W - 1)
    iy = (gy + 1.0) * 0.5 * (H - 1)
    x0 = np.floor(ix)
    y0 = np.floor(iy)
    x1 = x0 + 1.0
    y1 = y0 + 1.0
    wx1 = ix - x0
    wx0 = 1.0 - wx1
    wy1 = iy - y0
    wy0 = 1.0 - wy1
    out = np.zeros((B, N) + gx.shape, dtype=np.float64)
    for yc, wy in ((y0, wy0), (y1, wy1)):
        for xc, wx in ((x0, wx0), (x1, wx1)):
            valid = (xc >= 0) & (xc <= W - 1) & (yc >= 0) & (yc <= H - 1)
            xi = np.clip(xc, 0, W - 1).astype(np.int64)
            yi = np.clip(yc, 0, H - 1).astype(np.int64)
            vals = image[:, :, yi, xi]                       # (B, N, Hb, Wb)
            out = out + vals * (wy * wx * valid)[None, None]
    return out


if __name__ == "__main__":
    B, N, H, W = 2, 4, 16, 16
    row_bins, col_bins = 8, 16

    key = jax.random.PRNGKey(0)
    image = jax.random.normal(key, (B, N, H, W), dtype=jnp.float32)

    transform = make_cartesian_transform(row_bins, col_bins, H, W)
    out = jax.block_until_ready(transform(image))
    assert out.shape == (B, N, row_bins, col_bins)

    ref = ref_grid_sample_np(np.asarray(image),
                             make_warped_grid_np(row_bins, col_bins))
    err = float(np.max(np.abs(np.asarray(out, dtype=np.float64) - ref)))
    # bf16 operands (f32 MXU accumulation) -> ~1e-2 abs error on a 4-tap sum
    assert np.allclose(np.asarray(out, dtype=np.float64), ref,
                       atol=5e-2, rtol=5e-2), f"mismatch vs ref (max err {err})"

    print("KERNEL_OK")
</pallas_src>

<mosaic_0001>
module attributes {stable_mosaic.version = 11 : i64} {
  func.func @kernel_single(%arg0: i32, %arg1: i32, %arg2: memref<8x256xf32, #tpu.memory_space<vmem>>, %arg3: memref<256x128xbf16, #tpu.memory_space<vmem>>, %arg4: memref<8x128xf32, #tpu.memory_space<vmem>>) attributes {dimension_semantics = [#tpu.dimension_semantics<parallel>, #tpu.dimension_semantics<parallel>], iteration_bounds = array<i64: 1, 1>, scalar_prefetch = 0 : i64, scratch_operands = 0 : i64, tpu.core_type = #tpu.core_type<tc>, window_params = [{transform_indices = @transform_0, window_bounds = array<i64: 8, 256>}, {transform_indices = @transform_1, window_bounds = array<i64: 256, 128>}, {transform_indices = @transform_2, window_bounds = array<i64: 8, 128>}]} {
    %c0 = arith.constant 0 : index
    %c0_0 = arith.constant 0 : index
    %0 = vector.load %arg2[%c0, %c0_0] : memref<8x256xf32, #tpu.memory_space<vmem>>, vector<8x256xf32>
    %1 = arith.truncf %0 : vector<8x256xf32> to vector<8x256xbf16>
    %c0_1 = arith.constant 0 : index
    %c0_2 = arith.constant 0 : index
    %2 = vector.load %arg3[%c0_1, %c0_2] : memref<256x128xbf16, #tpu.memory_space<vmem>>, vector<256x128xbf16>
    %cst = arith.constant dense<0.000000e+00> : vector<8x128xf32>
    %3 = tpu.matmul %1, %2, %cst {dimension_numbers = #tpu.dot_dimension_numbers<[1], [0], [0], [1], [0, 0, 1, 1], [], []>} : vector<8x256xbf16>, vector<256x128xbf16>, vector<8x128xf32> -> vector<8x128xf32>
    %c0_3 = arith.constant 0 : index
    %c0_4 = arith.constant 0 : index
    %4 = vector.load %arg4[%c0_3, %c0_4] : memref<8x128xf32, #tpu.memory_space<vmem>>, vector<8x128xf32>
    tpu.vector_store %arg4[%c0_3, %c0_4], %3 {strides = array<i32>} : memref<8x128xf32, #tpu.memory_space<vmem>>, vector<8x128xf32>,
    return
  }
  func.func @transform_0(%arg0: i32, %arg1: i32) -> (i32, i32) {
    %c0_i32 = arith.constant 0 : i32
    %c0_i32_0 = arith.constant 0 : i32
    return %arg0, %c0_i32 : i32, i32
  }
  func.func @transform_1(%arg0: i32, %arg1: i32) -> (i32, i32) {
    %c0_i32 = arith.constant 0 : i32
    %c0_i32_0 = arith.constant 0 : i32
    return %c0_i32, %arg1 : i32, i32
  }
  func.func @transform_2(%arg0: i32, %arg1: i32) -> (i32, i32) {
    %c0_i32 = arith.constant 0 : i32
    return %arg0, %arg1 : i32, i32
  }
}

</mosaic_0001>

<llo_original>
// kernel: forward.1
$region0: #{forward.1}
  #allocation0 [shape = 'u32[]', space=smem, size = 0x4, offset = 0x4, fixed_abs, tag = 'smem constant byte address 0x4 - core index']
  #allocation1 [shape = 'u32[144,128]{1,0:T(1,128)}', space=vmem, size = 0x12000, scoped, tag = 'internal scratch']
  %s0 = inlined_call_operand.vmem [shape: f32[8,256], index: 0, kind: input, shape index: {}]
  %s1 = inlined_call_operand.vmem [shape: bf16[256,128], index: 1, kind: input, shape index: {}]
  %s2 = inlined_call_operand.vmem [shape: f32[8,128], index: 2, kind: output, shape index: {}]
  %s3 = sld [smem:[#allocation0]]
  $region18: #{forward.1} parent=0
    _
  %s5 = ssub.s32 1, %s3
  %s6 = scalar_select 0, %s5, %s3
  // Predicated region
  $region2: #{forward.1} parent=0 // pred_check
    _
  $region3: #{forward.1} parent=0 // pred_check_branch
    %8 = sbr.rel (0) target = $region5
  $region4: #{forward.1} parent=0 // pred_region
    _
  $region5: #{forward.1} parent=0 // pred_fallthru
    _
  // Predicated region
  $region6: #{forward.1} parent=0 // pred_check
    _
  $region7: #{forward.1} parent=0 // pred_check_branch
    %10 = sbr.rel (0) target = $region9
  $region8: #{forward.1} parent=0 // pred_region
    _
  $region9: #{forward.1} parent=0 // pred_fallthru
    _
  %v12 = vld [vmem:[%s0] sm:$0xff]
  %v13 = vld [vmem:[%s0 + $0x8] sm:$0xff]
  %v14 = vpack.c.bf16 %v12, %v12
  %v15 = vpack.c.bf16 %v13, %v13
  %v16 = vld [vmem:[%s1] sm:$0xf]
  %v17 = vld [vmem:[%s1 + $0x4] sm:$0xf]
  %v18 = vld [vmem:[%s1 + $0x8] sm:$0xf]
  %v19 = vld [vmem:[%s1 + $0xc] sm:$0xf]
  %v20 = vld [vmem:[%s1 + $0x10] sm:$0xf]
  %v21 = vld [vmem:[%s1 + $0x14] sm:$0xf]
  %v22 = vld [vmem:[%s1 + $0x18] sm:$0xf]
  %v23 = vld [vmem:[%s1 + $0x1c] sm:$0xf]
  %v24 = vld [vmem:[%s1 + $0x20] sm:$0xf]
  %v25 = vld [vmem:[%s1 + $0x24] sm:$0xf]
  %v26 = vld [vmem:[%s1 + $0x28] sm:$0xf]
  %v27 = vld [vmem:[%s1 + $0x2c] sm:$0xf]
  %v28 = vld [vmem:[%s1 + $0x30] sm:$0xf]
  %v29 = vld [vmem:[%s1 + $0x34] sm:$0xf]
  %v30 = vld [vmem:[%s1 + $0x38] sm:$0xf]
  %v31 = vld [vmem:[%s1 + $0x3c] sm:$0xf]
  %v32 = vld [vmem:[%s1 + $0x40] sm:$0xf]
  %v33 = vld [vmem:[%s1 + $0x44] sm:$0xf]
  %v34 = vld [vmem:[%s1 + $0x48] sm:$0xf]
  %v35 = vld [vmem:[%s1 + $0x4c] sm:$0xf]
  %v36 = vld [vmem:[%s1 + $0x50] sm:$0xf]
  %v37 = vld [vmem:[%s1 + $0x54] sm:$0xf]
  %v38 = vld [vmem:[%s1 + $0x58] sm:$0xf]
  %v39 = vld [vmem:[%s1 + $0x5c] sm:$0xf]
  %v40 = vld [vmem:[%s1 + $0x60] sm:$0xf]
  %v41 = vld [vmem:[%s1 + $0x64] sm:$0xf]
  %v42 = vld [vmem:[%s1 + $0x68] sm:$0xf]
  %v43 = vld [vmem:[%s1 + $0x6c] sm:$0xf]
  %v44 = vld [vmem:[%s1 + $0x70] sm:$0xf]
  %v45 = vld [vmem:[%s1 + $0x74] sm:$0xf]
  %v46 = vld [vmem:[%s1 + $0x78] sm:$0xf]
  %v47 = vld [vmem:[%s1 + $0x7c] sm:$0xf]
  %v80 = vunpack.c.l.b16 %v16
  %v81 = vunpack.c.l.b16 %v17
  %v82 = vunpack.c.l.b16 %v18
  %v83 = vunpack.c.l.b16 %v19
  %v84 = vunpack.c.l.b16 %v20
  %v85 = vunpack.c.l.b16 %v21
  %v86 = vunpack.c.l.b16 %v22
  %v87 = vunpack.c.l.b16 %v23
  %v88 = vunpack.c.l.b16 %v24
  %v89 = vunpack.c.l.b16 %v25
  %v90 = vunpack.c.l.b16 %v26
  %v91 = vunpack.c.l.b16 %v27
  %v92 = vunpack.c.l.b16 %v28
  %v93 = vunpack.c.l.b16 %v29
  %v94 = vunpack.c.l.b16 %v30
  %v95 = vunpack.c.l.b16 %v31
  %v96 = vunpack.c.l.b16 %v32
  %v97 = vunpack.c.l.b16 %v33
  %v98 = vunpack.c.l.b16 %v34
  %v99 = vunpack.c.l.b16 %v35
  %v100 = vunpack.c.l.b16 %v36
  %v101 = vunpack.c.l.b16 %v37
  %v102 = vunpack.c.l.b16 %v38
  %v103 = vunpack.c.l.b16 %v39
  %v104 = vunpack.c.l.b16 %v40
  %v105 = vunpack.c.l.b16 %v41
  %v106 = vunpack.c.l.b16 %v42
  %v107 = vunpack.c.l.b16 %v43
  %v108 = vunpack.c.l.b16 %v44
  %v109 = vunpack.c.l.b16 %v45
  %v110 = vunpack.c.l.b16 %v46
  %v111 = vunpack.c.l.b16 %v47
  %v112 = vpack.c.b16 %v81, %v80
  %v113 = vpack.c.b16 %v83, %v82
  %v114 = vpack.c.b16 %v85, %v84
  %v115 = vpack.c.b16 %v87, %v86
  %v116 = vpack.c.b16 %v89, %v88
  %v117 = vpack.c.b16 %v91, %v90
  %v118 = vpack.c.b16 %v93, %v92
  %v119 = vpack.c.b16 %v95, %v94
  %v120 = vpack.c.b16 %v97, %v96
  %v121 = vpack.c.b16 %v99, %v98
  %v122 = vpack.c.b16 %v101, %v100
  %v123 = vpack.c.b16 %v103, %v102
  %v124 = vpack.c.b16 %v105, %v104
  %v125 = vpack.c.b16 %v107, %v106
  %v126 = vpack.c.b16 %v109, %v108
  %v127 = vpack.c.b16 %v111, %v110
  %144 = vmatprep.subr.bf16.mxu0 0
  %145 = vmatpush1.bf16.msra.mxu0 %v119
  %146 = vmatprep.subr.bf16.mxu0 0
  %147 = vmatpush1.bf16.msra.mxu0 %v118
  %148 = vmatprep.subr.bf16.mxu0 0
  %149 = vmatpush1.bf16.msra.mxu0 %v117
  %150 = vmatprep.subr.bf16.mxu0 0
  %151 = vmatpush1.bf16.msra.mxu0 %v116
  %152 = vmatprep.subr.bf16.mxu0 0
  %153 = vmatpush1.bf16.msra.mxu0 %v115
  %154 = vmatprep.subr.bf16.mxu0 0
  %155 = vmatpush1.bf16.msra.mxu0 %v114
  %156 = vmatprep.subr.bf16.mxu0 0
  %157 = vmatpush1.bf16.msra.mxu0 %v113
  %158 = vmatprep.subr.bf16.mxu0 0
  %159 = vmatpush1.bf16.msra.mxu0 %v112
  %160 = vmatprep.subr.bf16.mxu0 0
  %161 = vmatpush2.bf16.msra.mxu0 %v127
  %162 = vmatprep.subr.bf16.mxu0 0
  %163 = vmatpush2.bf16.msra.mxu0 %v126
  %164 = vmatprep.subr.bf16.mxu0 0
  %165 = vmatpush2.bf16.msra.mxu0 %v125
  %166 = vmatprep.subr.bf16.mxu0 0
  %167 = vmatpush2.bf16.msra.mxu0 %v124
  %168 = vmatprep.subr.bf16.mxu0 0
  %169 = vmatpush2.bf16.msra.mxu0 %v123
  %170 = vmatprep.subr.bf16.mxu0 0
  %171 = vmatpush2.bf16.msra.mxu0 %v122
  %172 = vmatprep.subr.bf16.mxu0 0
  %173 = vmatpush2.bf16.msra.mxu0 %v121
  %174 = vmatprep.subr.bf16.mxu0 0
  %175 = vmatpush2.bf16.msra.mxu0 %v120
  %176 = vmatprep.mubr.bf16.mxu0 %v15
  %177 = vmatmul.mubr.bf16.gmra.mxu0 %v14
  %v178 = vpop.f32.mrf.mxu0
  %v179 = vadd.f32 0.0, %v178
  %v180 = vpop.f32.mrf.mxu0
  %v181 = vpop.f32.mrf.mxu0
  %v182 = vpop.f32.mrf.mxu0
  %183 = vdwg.mxu0
  %184 = vst [vmem:[%s2] sm:$0xff] %v179
  // Predicated region
  $region10: #{forward.1} parent=0 // pred_check
    _
  $region11: #{forward.1} parent=0 // pred_check_branch
    %186 = sbr.rel (0) target = $region13
  $region12: #{forward.1} parent=0 // pred_region
    _
  $region13: #{forward.1} parent=0 // pred_fallthru
    _
  // Predicated region
  $region14: #{forward.1} parent=0 // pred_check
    _
  $region15: #{forward.1} parent=0 // pred_check_branch
    %188 = sbr.rel (0) target = $region17
  $region16: #{forward.1} parent=0 // pred_region
    _
  $region17: #{forward.1} parent=0 // pred_fallthru
    _

</llo_original>
